<compile_context>
chip_gen: v5e
topology: v5e:2x2
jax: 0.10.0
libtpu: 0.0.40
codegen_flags: <defaults>
</compile_context>

<pallas_src>
import functools

import jax
import jax.numpy as jnp
from jax.experimental import pallas as pl
from jax.experimental.pallas import tpu as pltpu

HIDDEN = 128
LANE = 128
MAX_TB = 4096


def _round_up(n, m):
    return ((n + m - 1) // m) * m


def _pad_head(w3, b3):
    """Zero-pad the last linear layer's output columns to a lane multiple."""
    action_dim = w3.shape[1]
    n_pad = _round_up(action_dim, LANE)
    if n_pad == action_dim:
        return w3, b3, n_pad
    w3p = jnp.zeros((w3.shape[0], n_pad), w3.dtype).at[:, :action_dim].set(w3)
    b3p = jnp.zeros((1, n_pad), b3.dtype).at[:, :action_dim].set(b3)
    return w3p, b3p, n_pad


def _batch_tiling(B, tb, *, min_steps=2):
    """Pick (TB, B_pad).

    TB is a multiple of 8 (f32 sublane), <= min(tb, MAX_TB). The tile is
    derived from the grid-step count so that (a) batch padding is minimal for
    awkward batch sizes and (b) non-trivial batches get >= `min_steps` grid
    steps, letting v7x's two TensorCores split the "parallel" batch axis.
    """
    B8 = _round_up(max(B, 1), 8)
    tb = max(8, min(_round_up(tb, 8), MAX_TB))
    steps = max(pl.cdiv(B8, tb), 1)
    if B8 >= 2 * 8:                      # enough rows for two tiles
        steps = max(steps, min_steps)
    steps = min(steps, B8 // 8)          # tile must stay >= 8 rows
    TB = _round_up(pl.cdiv(B8, steps), 8)
    steps = pl.cdiv(B8, TB)
    return TB, TB * steps


_COMPILER_PARAMS = pltpu.CompilerParams(
    dimension_semantics=("parallel",),      # batch grid splits across TCs (v7x)
    vmem_limit_bytes=32 * 1024 * 1024,      # safe on v5e/v6e/v7x
)


def _bf16(x):
    return x.astype(jnp.bfloat16)


def _mlp(x, w1_ref, b1_ref, w2_ref, b2_ref, w3_ref, b3_ref):
    """3-layer MLP on VMEM tiles: bf16 MXU operands, f32 accumulation,
    f32 bias-add + ReLU (keeps the VPU path f32 for v5e)."""
    h1 = jnp.dot(_bf16(x), _bf16(w1_ref[...]),
                 preferred_element_type=jnp.float32)
    h1 = jnp.maximum(h1 + b1_ref[...], 0.0)
    h2 = jnp.dot(_bf16(h1), _bf16(w2_ref[...]),
                 preferred_element_type=jnp.float32)
    h2 = jnp.maximum(h2 + b2_ref[...], 0.0)
    q = jnp.dot(_bf16(h2), _bf16(w3_ref[...]),
                preferred_element_type=jnp.float32)
    return q + b3_ref[...]


# ----------------------------------------------------------------------------
# Kernels
# ----------------------------------------------------------------------------
def ddqn_kernel(x_ref, w1_ref, b1_ref, w2_ref, b2_ref, w3_ref, b3_ref, o_ref):
    o_ref[...] = _mlp(x_ref[...], w1_ref, b1_ref, w2_ref, b2_ref,
                      w3_ref, b3_ref).astype(o_ref.dtype)


def ddqn_act_kernel(x_ref, w1_ref, b1_ref, w2_ref, b2_ref, w3_ref, b3_ref,
                    a_ref, *, action_dim):
    """Forward + fused argmax over actions: output is a (TB, 1) int32 column,
    cutting HBM writeback ~128x vs. the padded Q slab."""
    q = _mlp(x_ref[...], w1_ref, b1_ref, w2_ref, b2_ref, w3_ref, b3_ref)
    col = jax.lax.broadcasted_iota(jnp.int32, q.shape, 1)
    qv = jnp.where(col < action_dim, q, -jnp.inf)      # mask padded columns
    m = jnp.max(qv, axis=-1, keepdims=True)
    # first index achieving the max (matches torch argmax tie-break)
    idx = jnp.min(jnp.where(qv == m, col, q.shape[-1]),
                  axis=-1, keepdims=True)
    a_ref[...] = idx.astype(jnp.int32)


def ddqn_double_kernel(x_ref, w1c_ref, b1c_ref,
                       w2o, b2o, w3o, b3o,
                       w2t, b2t, w3t, b3t, o_ref):
    """Online + target nets in one pass.

    Layer 1 uses the concatenated weights [w1o | w1t] so the first matmul is
    N=256 (fills v6e/v7x's 256-wide MXU); the result is written as a single
    lane-dense (TB, 2*n_pad) slab (split in the wrapper)."""
    xb = _bf16(x_ref[...])
    h1 = jnp.dot(xb, _bf16(w1c_ref[...]), preferred_element_type=jnp.float32)
    h1 = jnp.maximum(h1 + b1c_ref[...], 0.0)

    def tail(h1x, w2, b2, w3, b3):
        h2 = jnp.dot(_bf16(h1x), _bf16(w2[...]),
                     preferred_element_type=jnp.float32)
        h2 = jnp.maximum(h2 + b2[...], 0.0)
        q = jnp.dot(_bf16(h2), _bf16(w3[...]),
                    preferred_element_type=jnp.float32)
        return q + b3[...]

    qo = tail(h1[:, :HIDDEN], w2o, b2o, w3o, b3o)
    qt = tail(h1[:, HIDDEN:], w2t, b2t, w3t, b3t)
    o_ref[...] = jnp.concatenate([qo, qt], axis=-1).astype(o_ref.dtype)


# ----------------------------------------------------------------------------
# Wrappers
# ----------------------------------------------------------------------------
def _weight_spec(a):
    return pl.BlockSpec(a.shape, lambda i, nd=a.ndim: (0,) * nd)


def ddqn_forward(x, params, *, tb=2048):
    """Fused MLP forward. x: (B, obs_dim) f32. Returns (B, action_dim) f32."""
    w1, b1, w2, b2, w3, b3 = params
    B, obs_dim = x.shape
    action_dim = w3.shape[1]

    w3p, b3p, n_pad = _pad_head(w3, b3)
    TB, B_pad = _batch_tiling(B, tb)
    if B_pad != B:
        x = jnp.pad(x, ((0, B_pad - B), (0, 0)))

    flops = 2 * B_pad * (obs_dim * HIDDEN + HIDDEN * HIDDEN + HIDDEN * n_pad)
    bytes_accessed = 4 * (B_pad * obs_dim + w1.size + b1.size + w2.size +
                          b2.size + w3p.size + b3p.size + B_pad * n_pad)
    cost = pl.CostEstimate(flops=flops, transcendentals=0,
                           bytes_accessed=bytes_accessed)

    out = pl.pallas_call(
        ddqn_kernel,
        out_shape=jax.ShapeDtypeStruct((B_pad, n_pad), jnp.float32),
        grid=(B_pad // TB,),
        in_specs=[
            pl.BlockSpec((TB, obs_dim), lambda i: (i, 0)),
            _weight_spec(w1), _weight_spec(b1),
            _weight_spec(w2), _weight_spec(b2),
            _weight_spec(w3p), _weight_spec(b3p),
        ],
        out_specs=pl.BlockSpec((TB, n_pad), lambda i: (i, 0)),
        compiler_params=_COMPILER_PARAMS,
        cost_estimate=cost,
    )(x, w1, b1, w2, b2, w3p, b3p)

    return out[:B, :action_dim]


def ddqn_act(x, params, *, tb=2048):
    """Fused forward + argmax over actions. Returns (B,) int32 actions."""
    w1, b1, w2, b2, w3, b3 = params
    B, obs_dim = x.shape
    action_dim = w3.shape[1]

    w3p, b3p, n_pad = _pad_head(w3, b3)
    TB, B_pad = _batch_tiling(B, tb)
    if B_pad != B:
        x = jnp.pad(x, ((0, B_pad - B), (0, 0)))

    flops = 2 * B_pad * (obs_dim * HIDDEN + HIDDEN * HIDDEN + HIDDEN * n_pad)
    bytes_accessed = 4 * (B_pad * obs_dim + w1.size + b1.size + w2.size +
                          b2.size + w3p.size + b3p.size + B_pad)
    cost = pl.CostEstimate(flops=flops, transcendentals=0,
                           bytes_accessed=bytes_accessed)

    kernel = functools.partial(ddqn_act_kernel, action_dim=action_dim)
    acts = pl.pallas_call(
        kernel,
        out_shape=jax.ShapeDtypeStruct((B_pad, 1), jnp.int32),
        grid=(B_pad // TB,),
        in_specs=[
            pl.BlockSpec((TB, obs_dim), lambda i: (i, 0)),
            _weight_spec(w1), _weight_spec(b1),
            _weight_spec(w2), _weight_spec(b2),
            _weight_spec(w3p), _weight_spec(b3p),
        ],
        out_specs=pl.BlockSpec((TB, 1), lambda i: (i, 0)),
        compiler_params=_COMPILER_PARAMS,
        cost_estimate=cost,
    )(x, w1, b1, w2, b2, w3p, b3p)

    return acts[:B, 0]


def ddqn_double_forward(x, online_params, target_params, *, tb=2048):
    """Fused online-net + target-net forward in a single pallas_call.

    Returns (q_online, q_target), each (B, action_dim) f32."""
    w1o, b1o, w2o, b2o, w3o, b3o = online_params
    w1t, b1t, w2t, b2t, w3t, b3t = target_params
    B, obs_dim = x.shape
    action_dim = w3o.shape[1]

    w3op, b3op, n_pad = _pad_head(w3o, b3o)
    w3tp, b3tp, _ = _pad_head(w3t, b3t)
    # Fused layer-1: N = 256 matmul fills the v6e/v7x MXU.
    w1c = jnp.concatenate([w1o, w1t], axis=1)          # (obs_dim, 256)
    b1c = jnp.concatenate([b1o, b1t], axis=1)          # (1, 256)

    TB, B_pad = _batch_tiling(B, tb)
    if B_pad != B:
        x = jnp.pad(x, ((0, B_pad - B), (0, 0)))

    flops = 2 * 2 * B_pad * (obs_dim * HIDDEN + HIDDEN * HIDDEN + HIDDEN * n_pad)
    bytes_accessed = 4 * (B_pad * obs_dim
                          + w1c.size + b1c.size
                          + 2 * (w2o.size + b2o.size + w3op.size + b3op.size)
                          + 2 * B_pad * n_pad)
    cost = pl.CostEstimate(flops=flops, transcendentals=0,
                           bytes_accessed=bytes_accessed)

    out = pl.pallas_call(
        ddqn_double_kernel,
        out_shape=jax.ShapeDtypeStruct((B_pad, 2 * n_pad), jnp.float32),
        grid=(B_pad // TB,),
        in_specs=[
            pl.BlockSpec((TB, obs_dim), lambda i: (i, 0)),
            _weight_spec(w1c), _weight_spec(b1c),
            _weight_spec(w2o), _weight_spec(b2o),
            _weight_spec(w3op), _weight_spec(b3op),
            _weight_spec(w2t), _weight_spec(b2t),
            _weight_spec(w3tp), _weight_spec(b3tp),
        ],
        out_specs=pl.BlockSpec((TB, 2 * n_pad), lambda i: (i, 0)),
        compiler_params=_COMPILER_PARAMS,
        cost_estimate=cost,
    )(x, w1c, b1c, w2o, b2o, w3op, b3op, w2t, b2t, w3tp, b3tp)

    qo = out[:B, :action_dim]
    qt = out[:B, n_pad:n_pad + action_dim]
    return qo, qt


# ----------------------------------------------------------------------------
# Params / reference / test
# ----------------------------------------------------------------------------
def init_params(key, observation_dim, action_dim, hidden=HIDDEN):
    """Deterministic parameter init (Kaiming-uniform-ish), weights as (in, out)."""
    ks = jax.random.split(key, 6)

    def lin(kw, kb, fan_in, fan_out):
        bound = 1.0 / jnp.sqrt(fan_in)
        w = jax.random.uniform(kw, (fan_in, fan_out), jnp.float32, -bound, bound)
        b = jax.random.uniform(kb, (1, fan_out), jnp.float32, -bound, bound)
        return w, b

    w1, b1 = lin(ks[0], ks[1], observation_dim, hidden)
    w2, b2 = lin(ks[2], ks[3], hidden, hidden)
    w3, b3 = lin(ks[4], ks[5], hidden, action_dim)
    return (w1, b1, w2, b2, w3, b3)


def _reference(x, params):
    """Full-precision f32 reference (kernel uses bf16 operands / f32 accum)."""
    w1, b1, w2, b2, w3, b3 = params
    hi = jax.lax.Precision.HIGHEST
    h = jnp.maximum(jnp.dot(x, w1, precision=hi) + b1, 0.0)
    h = jnp.maximum(jnp.dot(h, w2, precision=hi) + b2, 0.0)
    return jnp.dot(h, w3, precision=hi) + b3


if __name__ == "__main__":
    key = jax.random.PRNGKey(0)
    k_online, k_target, k_x1, k_x2 = jax.random.split(key, 4)

    observation_dim = 16
    action_dim = 8

    online_params = init_params(k_online, observation_dim, action_dim)
    target_params = init_params(k_target, observation_dim, action_dim)

    TOL = dict(atol=5e-2, rtol=5e-2)   # bf16-operand matmul vs f32 reference

    # --- small per-step batch (single-tile path) ---
    batch = 8
    x = jax.random.normal(k_x1, (batch, observation_dim), jnp.float32)
    q = ddqn_forward(x, online_params)
    jax.block_until_ready(q)
    ref = _reference(x, online_params)
    assert q.shape == (batch, action_dim)
    assert jnp.allclose(q, ref, **TOL)

    # --- larger, non-multiple batch (multi-tile grid + minimal batch padding) ---
    batch2 = 300
    x2 = jax.random.normal(k_x2, (batch2, observation_dim), jnp.float32)
    q2 = ddqn_forward(x2, online_params, tb=128)
    jax.block_until_ready(q2)
    ref2 = _reference(x2, online_params)
    assert q2.shape == (batch2, action_dim)
    assert jnp.allclose(q2, ref2, **TOL)

    # --- fused double-DQN forward (online + target nets, one launch) ---
    qo, qt = ddqn_double_forward(x, online_params, target_params)
    jax.block_until_ready(qo)
    jax.block_until_ready(qt)
    assert jnp.allclose(qo, _reference(x, online_params), **TOL)
    assert jnp.allclose(qt, _reference(x, target_params), **TOL)

    # --- fused forward + argmax (the `act` consumer) ---
    acts = ddqn_act(x2, online_params)
    jax.block_until_ready(acts)
    assert acts.shape == (batch2,)
    q_at_act = jnp.take_along_axis(q2, acts[:, None].astype(jnp.int32), axis=1)
    assert jnp.all(q_at_act >= q2.max(axis=1, keepdims=True) - 1e-3)

    print("KERNEL_OK")
</pallas_src>

<mosaic_0001>
module attributes {stable_mosaic.version = 11 : i64} {
  func.func @ddqn_kernel(%arg0: i32, %arg1: memref<8x16xf32, #tpu.memory_space<vmem>>, %arg2: memref<16x128xf32, #tpu.memory_space<vmem>>, %arg3: memref<1x128xf32, #tpu.memory_space<vmem>>, %arg4: memref<128x128xf32, #tpu.memory_space<vmem>>, %arg5: memref<1x128xf32, #tpu.memory_space<vmem>>, %arg6: memref<128x128xf32, #tpu.memory_space<vmem>>, %arg7: memref<1x128xf32, #tpu.memory_space<vmem>>, %arg8: memref<8x128xf32, #tpu.memory_space<vmem>>) attributes {dimension_semantics = [#tpu.dimension_semantics<parallel>], iteration_bounds = array<i64: 1>, scalar_prefetch = 0 : i64, scratch_operands = 0 : i64, tpu.core_type = #tpu.core_type<tc>, window_params = [{transform_indices = @transform_0, window_bounds = array<i64: 8, 16>}, {pipeline_mode = #tpu.pipeline_mode<synchronous>, transform_indices = @transform_1, window_bounds = array<i64: 16, 128>}, {pipeline_mode = #tpu.pipeline_mode<synchronous>, transform_indices = @transform_2, window_bounds = array<i64: 1, 128>}, {pipeline_mode = #tpu.pipeline_mode<synchronous>, transform_indices = @transform_3, window_bounds = array<i64: 128, 128>}, {pipeline_mode = #tpu.pipeline_mode<synchronous>, transform_indices = @transform_4, window_bounds = array<i64: 1, 128>}, {pipeline_mode = #tpu.pipeline_mode<synchronous>, transform_indices = @transform_5, window_bounds = array<i64: 128, 128>}, {pipeline_mode = #tpu.pipeline_mode<synchronous>, transform_indices = @transform_6, window_bounds = array<i64: 1, 128>}, {transform_indices = @transform_7, window_bounds = array<i64: 8, 128>}]} {
    %c0 = arith.constant 0 : index
    %c0_0 = arith.constant 0 : index
    %0 = vector.load %arg1[%c0, %c0_0] : memref<8x16xf32, #tpu.memory_space<vmem>>, vector<8x16xf32>
    %1 = arith.truncf %0 : vector<8x16xf32> to vector<8x16xbf16>
    %c0_1 = arith.constant 0 : index
    %c0_2 = arith.constant 0 : index
    %2 = vector.load %arg2[%c0_1, %c0_2] : memref<16x128xf32, #tpu.memory_space<vmem>>, vector<16x128xf32>
    %3 = arith.truncf %2 : vector<16x128xf32> to vector<16x128xbf16>
    %cst = arith.constant dense<0.000000e+00> : vector<8x128xf32>
    %4 = tpu.matmul %1, %3, %cst {dimension_numbers = #tpu.dot_dimension_numbers<[1], [0], [0], [1], [0, 0, 1, 1], [], []>} : vector<8x16xbf16>, vector<16x128xbf16>, vector<8x128xf32> -> vector<8x128xf32>
    %c0_3 = arith.constant 0 : index
    %c0_4 = arith.constant 0 : index
    %5 = vector.load %arg3[%c0_3, %c0_4] : memref<1x128xf32, #tpu.memory_space<vmem>>, vector<1x128xf32>
    %6 = vector.broadcast %5 : vector<1x128xf32> to vector<8x128xf32>
    %7 = arith.addf %4, %6 : vector<8x128xf32>
    %cst_5 = arith.constant 0.000000e+00 : f32
    %8 = vector.broadcast %cst_5 : f32 to vector<8x128xf32>
    %9 = arith.maximumf %7, %8 : vector<8x128xf32>
    %10 = arith.truncf %9 : vector<8x128xf32> to vector<8x128xbf16>
    %c0_6 = arith.constant 0 : index
    %c0_7 = arith.constant 0 : index
    %11 = vector.load %arg4[%c0_6, %c0_7] : memref<128x128xf32, #tpu.memory_space<vmem>>, vector<128x128xf32>
    %12 = arith.truncf %11 : vector<128x128xf32> to vector<128x128xbf16>
    %cst_8 = arith.constant dense<0.000000e+00> : vector<8x128xf32>
    %13 = tpu.matmul %10, %12, %cst_8 {dimension_numbers = #tpu.dot_dimension_numbers<[1], [0], [0], [1], [0, 0, 1, 1], [], []>} : vector<8x128xbf16>, vector<128x128xbf16>, vector<8x128xf32> -> vector<8x128xf32>
    %c0_9 = arith.constant 0 : index
    %c0_10 = arith.constant 0 : index
    %14 = vector.load %arg5[%c0_9, %c0_10] : memref<1x128xf32, #tpu.memory_space<vmem>>, vector<1x128xf32>
    %15 = vector.broadcast %14 : vector<1x128xf32> to vector<8x128xf32>
    %16 = arith.addf %13, %15 : vector<8x128xf32>
    %cst_11 = arith.constant 0.000000e+00 : f32
    %17 = vector.broadcast %cst_11 : f32 to vector<8x128xf32>
    %18 = arith.maximumf %16, %17 : vector<8x128xf32>
    %19 = arith.truncf %18 : vector<8x128xf32> to vector<8x128xbf16>
    %c0_12 = arith.constant 0 : index
    %c0_13 = arith.constant 0 : index
    %20 = vector.load %arg6[%c0_12, %c0_13] : memref<128x128xf32, #tpu.memory_space<vmem>>, vector<128x128xf32>
    %21 = arith.truncf %20 : vector<128x128xf32> to vector<128x128xbf16>
    %cst_14 = arith.constant dense<0.000000e+00> : vector<8x128xf32>
    %22 = tpu.matmul %19, %21, %cst_14 {dimension_numbers = #tpu.dot_dimension_numbers<[1], [0], [0], [1], [0, 0, 1, 1], [], []>} : vector<8x128xbf16>, vector<128x128xbf16>, vector<8x128xf32> -> vector<8x128xf32>
    %c0_15 = arith.constant 0 : index
    %c0_16 = arith.constant 0 : index
    %23 = vector.load %arg7[%c0_15, %c0_16] : memref<1x128xf32, #tpu.memory_space<vmem>>, vector<1x128xf32>
    %24 = vector.broadcast %23 : vector<1x128xf32> to vector<8x128xf32>
    %25 = arith.addf %22, %24 : vector<8x128xf32>
    %c0_17 = arith.constant 0 : index
    %c0_18 = arith.constant 0 : index
    %26 = vector.load %arg8[%c0_17, %c0_18] : memref<8x128xf32, #tpu.memory_space<vmem>>, vector<8x128xf32>
    tpu.vector_store %arg8[%c0_17, %c0_18], %25 {strides = array<i32>} : memref<8x128xf32, #tpu.memory_space<vmem>>, vector<8x128xf32>,
    return
  }
  func.func @transform_0(%arg0: i32) -> (i32, i32) {
    %c0_i32 = arith.constant 0 : i32
    %c0_i32_0 = arith.constant 0 : i32
    return %arg0, %c0_i32 : i32, i32
  }
  func.func @transform_1(%arg0: i32) -> (i32, i32) {
    %c0_i32 = arith.constant 0 : i32
    %c0_i32_0 = arith.constant 0 : i32
    %c0_i32_1 = arith.constant 0 : i32
    return %c0_i32, %c0_i32_0 : i32, i32
  }
  func.func @transform_2(%arg0: i32) -> (i32, i32) {
    %c0_i32 = arith.constant 0 : i32
    %c0_i32_0 = arith.constant 0 : i32
    %c0_i32_1 = arith.constant 0 : i32
    return %c0_i32, %c0_i32_0 : i32, i32
  }
  func.func @transform_3(%arg0: i32) -> (i32, i32) {
    %c0_i32 = arith.constant 0 : i32
    %c0_i32_0 = arith.constant 0 : i32
    %c0_i32_1 = arith.constant 0 : i32
    return %c0_i32, %c0_i32_0 : i32, i32
  }
  func.func @transform_4(%arg0: i32) -> (i32, i32) {
    %c0_i32 = arith.constant 0 : i32
    %c0_i32_0 = arith.constant 0 : i32
    %c0_i32_1 = arith.constant 0 : i32
    return %c0_i32, %c0_i32_0 : i32, i32
  }
  func.func @transform_5(%arg0: i32) -> (i32, i32) {
    %c0_i32 = arith.constant 0 : i32
    %c0_i32_0 = arith.constant 0 : i32
    %c0_i32_1 = arith.constant 0 : i32
    return %c0_i32, %c0_i32_0 : i32, i32
  }
  func.func @transform_6(%arg0: i32) -> (i32, i32) {
    %c0_i32 = arith.constant 0 : i32
    %c0_i32_0 = arith.constant 0 : i32
    %c0_i32_1 = arith.constant 0 : i32
    return %c0_i32, %c0_i32_0 : i32, i32
  }
  func.func @transform_7(%arg0: i32) -> (i32, i32) {
    %c0_i32 = arith.constant 0 : i32
    %c0_i32_0 = arith.constant 0 : i32
    return %arg0, %c0_i32 : i32, i32
  }
}

</mosaic_0001>

<llo_original>
// kernel: tpu_custom_call.1
$region0: #{tpu_custom_call.1}
  #allocation0 [shape = 'u32[]', space=smem, size = 0x4, offset = 0x4, fixed_abs, tag = 'smem constant byte address 0x4 - core index']
  #allocation1 [shape = 'u32[72,128]{1,0:T(1,128)}', space=vmem, size = 0x9000, scoped, tag = 'internal scratch']
  %s0 = inlined_call_operand.hbm [shape: f32[8,16], index: 0, kind: input, shape index: {}]
  %s1 = inlined_call_operand.hbm [shape: f32[16,128], index: 1, kind: input, shape index: {}]
  %s2 = inlined_call_operand.vmem [shape: f32[1,128], index: 2, kind: input, shape index: {}]
  %s3 = inlined_call_operand.hbm [shape: f32[128,128], index: 3, kind: input, shape index: {}]
  %s4 = inlined_call_operand.vmem [shape: f32[1,128], index: 4, kind: input, shape index: {}]
  %s5 = inlined_call_operand.hbm [shape: f32[128,128], index: 5, kind: input, shape index: {}]
  %s6 = inlined_call_operand.vmem [shape: f32[1,128], index: 6, kind: input, shape index: {}]
  %s7 = inlined_call_operand.hbm [shape: f32[8,128], index: 7, kind: output, shape index: {}]
  %s8 = sld [smem:[#allocation0]]
  $region54: #{tpu_custom_call.1} parent=0
    _
  %s10 = ssub.s32 1, %s8
  %s11 = scalar_select 0, %s10, %s8
  $region1: #{tpu_custom_call.1} parent=0
    #allocation2 [shape = 'u8[4096]{0}', space=vmem, size = 0x1000, scoped, tag = 'input window, operand 0, single buffered']
    #allocation3 [shape = 's32[1]{0}', space=sflag, size = 0x4, scoped, tag = 'scoped memory for tpu_custom_call.1']
    #allocation4 [shape = 's32[1]{0}', space=sflag, size = 0x4, scoped, tag = 'scoped memory for tpu_custom_call.1']
    #allocation5 [shape = 'u8[8192]{0}', space=vmem, size = 0x2000, scoped, tag = 'input window, operand 1, single buffered']
    #allocation6 [shape = 's32[1]{0}', space=sflag, size = 0x4, scoped, tag = 'scoped memory for tpu_custom_call.1']
    #allocation7 [shape = 'u8[65536]{0}', space=vmem, size = 0x10000, scoped, tag = 'input window, operand 3, single buffered']
    #allocation8 [shape = 'u8[65536]{0}', space=vmem, size = 0x10000, scoped, tag = 'input window, operand 5, single buffered']
    #allocation9 [shape = 's32[1]{0}', space=sflag, size = 0x4, scoped, tag = 'scoped memory for tpu_custom_call.1']
    #allocation10 [shape = 'u8[4096]{0}', space=vmem, size = 0x1000, scoped, tag = 'output window, operand 0, single buffered']
    %12 = vsyncpa [#allocation3], 0
    %13 = vsyncpa [#allocation6], 0
    %14 = vsyncpa [#allocation9], 0
    %15 = vsyncpa [#allocation4], 0
    // Predicated region
    $region2: #{tpu_custom_call.1} parent=1 // pred_check
      _
    $region3: #{tpu_custom_call.1} parent=1 // pred_check_branch
      %17 = sbr.rel (0) target = $region5
    $region4: #{tpu_custom_call.1} parent=1 // pred_region
      %19 = vsyncadd [#allocation3], 0
      %s21 = sshll.u32 %s0, 4
      %s22 = int_to_ptr.hbm [resolvable:$true] %s21
      %s23 = sshll.u32 [#allocation2], 4
      %s24 = int_to_ptr.vmem [resolvable:$true] %s23
      %26 = dma.hbm_to_vmem [thread:$0]  %s22, 128, %s24, [#allocation3]
    $region5: #{tpu_custom_call.1} parent=1 // pred_fallthru
      _
    // Predicated region
    $region6: #{tpu_custom_call.1} parent=1 // pred_check
      _
    $region7: #{tpu_custom_call.1} parent=1 // pred_check_branch
      %28 = sbr.rel (0) target = $region9
    $region8: #{tpu_custom_call.1} parent=1 // pred_region
      %30 = vsyncadd [#allocation6], 0
      %s31 = sshll.u32 %s1, 4
      %s32 = int_to_ptr.hbm [resolvable:$true] %s31
      %s33 = sshll.u32 [#allocation5], 4
      %s34 = int_to_ptr.vmem [resolvable:$true] %s33
      %39 = dma.hbm_to_vmem [thread:$0]  %s32, 256, %s34, [#allocation6], 128, 128, 8
    $region9: #{tpu_custom_call.1} parent=1 // pred_fallthru
      _
    // Predicated region
    $region10: #{tpu_custom_call.1} parent=1 // pred_check
      _
    $region11: #{tpu_custom_call.1} parent=1 // pred_check_branch
      %41 = sbr.rel (0) target = $region13
    $region12: #{tpu_custom_call.1} parent=1 // pred_region
      _
    $region13: #{tpu_custom_call.1} parent=1 // pred_fallthru
      _
    // Predicated region
    $region14: #{tpu_custom_call.1} parent=1 // pred_check
      _
    $region15: #{tpu_custom_call.1} parent=1 // pred_check_branch
      %43 = sbr.rel (0) target = $region17
    $region16: #{tpu_custom_call.1} parent=1 // pred_region
      %45 = vsyncadd [#allocation6], 0
      %s46 = sshll.u32 %s3, 4
      %s47 = int_to_ptr.hbm [resolvable:$true] %s46
      %s48 = sshll.u32 [#allocation7], 4
      %s49 = int_to_ptr.vmem [resolvable:$true] %s48
      %54 = dma.hbm_to_vmem [thread:$0]  %s47, 2048, %s49, [#allocation6], 128, 128, 8
    $region17: #{tpu_custom_call.1} parent=1 // pred_fallthru
      _
    // Predicated region
    $region18: #{tpu_custom_call.1} parent=1 // pred_check
      _
    $region19: #{tpu_custom_call.1} parent=1 // pred_check_branch
      %56 = sbr.rel (0) target = $region21
    $region20: #{tpu_custom_call.1} parent=1 // pred_region
      _
    $region21: #{tpu_custom_call.1} parent=1 // pred_fallthru
      _
    // Predicated region
    $region22: #{tpu_custom_call.1} parent=1 // pred_check
      _
    $region23: #{tpu_custom_call.1} parent=1 // pred_check_branch
      %58 = sbr.rel (0) target = $region25
    $region24: #{tpu_custom_call.1} parent=1 // pred_region
      %60 = vsyncadd [#allocation9], 0
      %s61 = sshll.u32 %s5, 4
      %s62 = int_to_ptr.hbm [resolvable:$true] %s61
      %s63 = sshll.u32 [#allocation8], 4
      %s64 = int_to_ptr.vmem [resolvable:$true] %s63
      %69 = dma.hbm_to_vmem [thread:$0]  %s62, 2048, %s64, [#allocation9], 128, 128, 8
    $region25: #{tpu_custom_call.1} parent=1 // pred_fallthru
      _
    // Predicated region
    $region26: #{tpu_custom_call.1} parent=1 // pred_check
      _
    $region27: #{tpu_custom_call.1} parent=1 // pred_check_branch
      %71 = sbr.rel (0) target = $region29
    $region28: #{tpu_custom_call.1} parent=1 // pred_region
      _
    $region29: #{tpu_custom_call.1} parent=1 // pred_fallthru
      _
    // Predicated region
    $region30: #{tpu_custom_call.1} parent=1 // pred_check
      _
    $region31: #{tpu_custom_call.1} parent=1 // pred_check_branch
      %73 = sbr.rel (0) target = $region33
    $region32: #{tpu_custom_call.1} parent=1 // pred_region
      %75 = dma.done [#allocation3], 128
    $region33: #{tpu_custom_call.1} parent=1 // pred_fallthru
      _
    // Predicated region
    $region34: #{tpu_custom_call.1} parent=1 // pred_check
      _
    $region35: #{tpu_custom_call.1} parent=1 // pred_check_branch
      %77 = sbr.rel (0) target = $region37
    $region36: #{tpu_custom_call.1} parent=1 // pred_region
      %79 = dma.done [#allocation6], 256
    $region37: #{tpu_custom_call.1} parent=1 // pred_fallthru
      _
    // Predicated region
    $region38: #{tpu_custom_call.1} parent=1 // pred_check
      _
    $region39: #{tpu_custom_call.1} parent=1 // pred_check_branch
      %81 = sbr.rel (0) target = $region41
    $region40: #{tpu_custom_call.1} parent=1 // pred_region
      %83 = dma.done [#allocation6], 2048
    $region41: #{tpu_custom_call.1} parent=1 // pred_fallthru
      _
    // Predicated region
    $region42: #{tpu_custom_call.1} parent=1 // pred_check
      _
    $region43: #{tpu_custom_call.1} parent=1 // pred_check_branch
      %85 = sbr.rel (0) target = $region45
    $region44: #{tpu_custom_call.1} parent=1 // pred_region
      %87 = dma.done [#allocation9], 2048
    $region45: #{tpu_custom_call.1} parent=1 // pred_fallthru
      _
    %v89 = vld [vmem:[#allocation2] sm:$0xff]
    %v90 = vpack.c.bf16 %v89, %v89
    %v91 = vld [vmem:[#allocation5] sm:$0xff]
    %v92 = vld [vmem:[#allocation5 + $0x8] sm:$0xff]
    %v93 = vpack.c.bf16 %v92, %v91
    %v94 = vld [vmem:[%s2] sm:$0x1]
    %v96 = vperm.slane %v94, 0
    %vm98 = vcmask 130048
    %v100 = vsel %vm98, %v90, 0
    %102 = vmatpush.bf16.msra.mxu0 0
    %103 = vmatpush.bf16.msra.mxu0 0
    %104 = vmatpush.bf16.msra.mxu0 0
    %105 = vmatpush.bf16.msra.mxu0 0
    %106 = vmatpush.bf16.msra.mxu0 0
    %107 = vmatpush.bf16.msra.mxu0 0
    %108 = vmatpush.bf16.msra.mxu0 0
    %109 = vmatpush.bf16.msra.mxu0 %v93
    %110 = vmatmul.bf16.gmra.mxu0 %v100
    %v111 = vpop.f32.mrf.mxu0
    %v112 = vadd.f32 %v96, %v111
    %v113 = vpop.f32.mrf.mxu0
    %114 = vdwg.mxu0
    %v115 = vmax.f32 %v112, 0.0
    %v116 = vpack.c.bf16 %v115, %v115
    %v117 = vld [vmem:[#allocation7] sm:$0xff]
    %v118 = vld [vmem:[#allocation7 + $0x8] sm:$0xff]
    %v119 = vld [vmem:[#allocation7 + $0x10] sm:$0xff]
    %v120 = vld [vmem:[#allocation7 + $0x18] sm:$0xff]
    %v121 = vld [vmem:[#allocation7 + $0x20] sm:$0xff]
    %v122 = vld [vmem:[#allocation7 + $0x28] sm:$0xff]
    %v123 = vld [vmem:[#allocation7 + $0x30] sm:$0xff]
    %v124 = vld [vmem:[#allocation7 + $0x38] sm:$0xff]
    %v125 = vld [vmem:[#allocation7 + $0x40] sm:$0xff]
    %v126 = vld [vmem:[#allocation7 + $0x48] sm:$0xff]
    %v127 = vld [vmem:[#allocation7 + $0x50] sm:$0xff]
    %v128 = vld [vmem:[#allocation7 + $0x58] sm:$0xff]
    %v129 = vld [vmem:[#allocation7 + $0x60] sm:$0xff]
    %v130 = vld [vmem:[#allocation7 + $0x68] sm:$0xff]
    %v131 = vld [vmem:[#allocation7 + $0x70] sm:$0xff]
    %v132 = vld [vmem:[#allocation7 + $0x78] sm:$0xff]
    %v133 = vpack.c.bf16 %v118, %v117
    %v134 = vpack.c.bf16 %v120, %v119
    %v135 = vpack.c.bf16 %v122, %v121
    %v136 = vpack.c.bf16 %v124, %v123
    %v137 = vpack.c.bf16 %v126, %v125
    %v138 = vpack.c.bf16 %v128, %v127
    %v139 = vpack.c.bf16 %v130, %v129
    %v140 = vpack.c.bf16 %v132, %v131
    %v141 = vld [vmem:[%s4] sm:$0x1]
    %v143 = vperm.slane %v141, 0
    %145 = vmatpush.bf16.msra.mxu0 %v140
    %146 = vmatpush.bf16.msra.mxu0 %v139
    %147 = vmatpush.bf16.msra.mxu0 %v138
    %148 = vmatpush.bf16.msra.mxu0 %v137
    %149 = vmatpush.bf16.msra.mxu0 %v136
    %150 = vmatpush.bf16.msra.mxu0 %v135
    %151 = vmatpush.bf16.msra.mxu0 %v134
    %152 = vmatpush.bf16.msra.mxu0 %v133
    %153 = vmatmul.bf16.gmra.mxu0 %v116
    %v154 = vpop.f32.mrf.mxu0
    %v155 = vadd.f32 %v143, %v154
    %v156 = vpop.f32.mrf.mxu0
    %157 = vdwg.mxu0
    %v158 = vmax.f32 %v155, 0.0
    %v159 = vpack.c.bf16 %v158, %v158
    %v160 = vld [vmem:[#allocation8] sm:$0xff]
    %v161 = vld [vmem:[#allocation8 + $0x8] sm:$0xff]
    %v162 = vld [vmem:[#allocation8 + $0x10] sm:$0xff]
    %v163 = vld [vmem:[#allocation8 + $0x18] sm:$0xff]
    %v164 = vld [vmem:[#allocation8 + $0x20] sm:$0xff]
    %v165 = vld [vmem:[#allocation8 + $0x28] sm:$0xff]
    %v166 = vld [vmem:[#allocation8 + $0x30] sm:$0xff]
    %v167 = vld [vmem:[#allocation8 + $0x38] sm:$0xff]
    %v168 = vld [vmem:[#allocation8 + $0x40] sm:$0xff]
    %v169 = vld [vmem:[#allocation8 + $0x48] sm:$0xff]
    %v170 = vld [vmem:[#allocation8 + $0x50] sm:$0xff]
    %v171 = vld [vmem:[#allocation8 + $0x58] sm:$0xff]
    %v172 = vld [vmem:[#allocation8 + $0x60] sm:$0xff]
    %v173 = vld [vmem:[#allocation8 + $0x68] sm:$0xff]
    %v174 = vld [vmem:[#allocation8 + $0x70] sm:$0xff]
    %v175 = vld [vmem:[#allocation8 + $0x78] sm:$0xff]
    %v176 = vpack.c.bf16 %v161, %v160
    %v177 = vpack.c.bf16 %v163, %v162
    %v178 = vpack.c.bf16 %v165, %v164
    %v179 = vpack.c.bf16 %v167, %v166
    %v180 = vpack.c.bf16 %v169, %v168
    %v181 = vpack.c.bf16 %v171, %v170
    %v182 = vpack.c.bf16 %v173, %v172
    %v183 = vpack.c.bf16 %v175, %v174
    %v184 = vld [vmem:[%s6] sm:$0x1]
    %v186 = vperm.slane %v184, 0
    %188 = vmatpush.bf16.msra.mxu0 %v183
    %189 = vmatpush.bf16.msra.mxu0 %v182
    %190 = vmatpush.bf16.msra.mxu0 %v181
    %191 = vmatpush.bf16.msra.mxu0 %v180
    %192 = vmatpush.bf16.msra.mxu0 %v179
    %193 = vmatpush.bf16.msra.mxu0 %v178
    %194 = vmatpush.bf16.msra.mxu0 %v177
    %195 = vmatpush.bf16.msra.mxu0 %v176
    %196 = vmatmul.bf16.gmra.mxu0 %v159
    %v197 = vpop.f32.mrf.mxu0
    %v198 = vadd.f32 %v186, %v197
    %v199 = vpop.f32.mrf.mxu0
    %200 = vdwg.mxu0
    %201 = vst [vmem:[#allocation10] sm:$0xff] %v198
    // Predicated region
    $region46: #{tpu_custom_call.1} parent=1 // pred_check
      _
    $region47: #{tpu_custom_call.1} parent=1 // pred_check_branch
      %203 = sbr.rel (0) target = $region49
    $region48: #{tpu_custom_call.1} parent=1 // pred_region
      %205 = vsyncadd [#allocation4], 0
      %s207 = sshll.u32 [#allocation10], 4
      %s208 = int_to_ptr.vmem [resolvable:$true] %s207
      %s209 = sshll.u32 %s7, 4
      %s210 = int_to_ptr.hbm [resolvable:$true] %s209
      %212 = dma.vmem_to_hbm [thread:$0]  %s208, 128, %s210, [#allocation4]
    $region49: #{tpu_custom_call.1} parent=1 // pred_fallthru
      _
    // Predicated region
    $region50: #{tpu_custom_call.1} parent=1 // pred_check
      _
    $region51: #{tpu_custom_call.1} parent=1 // pred_check_branch
      %214 = sbr.rel (0) target = $region53
    $region52: #{tpu_custom_call.1} parent=1 // pred_region
      %216 = dma.done [#allocation4], 128
    $region53: #{tpu_custom_call.1} parent=1 // pred_fallthru
      _
    %217 = vsyncpa [#allocation3], 1
    %218 = vsyncpa [#allocation6], 1
    %219 = vsyncpa [#allocation9], 1
    %220 = vsyncpa [#allocation4], 1

</llo_original>
